<compile_context>
chip_gen: v7x
topology: tpu7x:2x2x1
jax: 0.10.0
libtpu: 0.0.40
codegen_flags: <defaults>
</compile_context>

<pallas_src>
import jax
import jax.numpy as jnp
from jax.experimental import pallas as pl
from jax.experimental.pallas import tpu as pltpu


def _param_transform_kernel(scale_ref, bias_ref, x_ref, o_ref):
    # scale_ref: (tD, N)      precomputed lora_B @ lora_A tile
    # bias_ref:  (tD, N)
    # x_ref:     (1, N, tL)   current (batch, L-tile) slice
    # o_ref:     (1, tD, N, tL)
    scale = scale_ref[...].astype(jnp.float32)                   # (tD, N)
    bias = bias_ref[...].astype(jnp.float32)                     # (tD, N)
    x = x_ref[...].astype(jnp.float32)                           # (1, N, tL)
    y = (scale[None, :, :, None] * x[:, None, :, :]              # (1, tD, N, tL)
         + bias[None, :, :, None])
    o_ref[...] = y.astype(o_ref.dtype)


def _pick_tile_d(D, target=256):
    # tD must be a multiple of 8 (sublane) or equal to D.
    if D <= target:
        return D
    return (target // 8) * 8


def _pick_tile_l(L, target=512):
    # tL must be a multiple of 128 (lane) or equal to L.
    if L <= target:
        return L
    return (target // 128) * 128


def parameter_transform(x, lora_A, lora_B, bias, *, tile_d=None, tile_l=None):
    """x: (B, N, L); lora_A: (r, N); lora_B: (D, r); bias: (1, D, N, 1).

    Returns (B, D, N, L), matching
        rearrange(x,'b n l -> b 1 n l') * (lora_B @ lora_A)[None,:,:,None] + bias
    """
    B, N, L = x.shape
    D, r = lora_B.shape

    # Hoist the tiny LoRA matmul out of the per-tile body (one small XLA op).
    scale2d = jnp.dot(lora_B, lora_A,
                      preferred_element_type=jnp.float32).astype(x.dtype)  # (D, N)
    bias2d = bias.reshape(D, N)  # glue: squeeze the broadcast dims

    tD = tile_d if tile_d is not None else _pick_tile_d(D)
    tL = tile_l if tile_l is not None else _pick_tile_l(L)

    grid = (B, pl.cdiv(L, tL), pl.cdiv(D, tD))  # D innermost -> x tile resident

    itemsize = jnp.dtype(x.dtype).itemsize
    out_tile_bytes = tD * N * tL * itemsize
    x_tile_bytes = N * tL * itemsize
    param_tile_bytes = 2 * tD * N * itemsize
    # Double-buffered out + x, params resident; add headroom. Cap at 48 MiB so
    # the same setting is safe on v7x's 64 MiB physical VMEM.
    vmem_limit = min(max(4 * (out_tile_bytes + x_tile_bytes + param_tile_bytes),
                         32 * 1024 * 1024),
                     48 * 1024 * 1024)

    out_shape = jax.ShapeDtypeStruct((B, D, N, L), x.dtype)
    grid_spec = pltpu.PrefetchScalarGridSpec(
        num_scalar_prefetch=0,
        grid=grid,
        in_specs=[
            pl.BlockSpec((tD, N), lambda b, l, d: (d, 0)),        # scale tile
            pl.BlockSpec((tD, N), lambda b, l, d: (d, 0)),        # bias tile
            pl.BlockSpec((1, N, tL), lambda b, l, d: (b, 0, l)),  # x (D-invariant)
        ],
        out_specs=pl.BlockSpec((1, tD, N, tL), lambda b, l, d: (b, d, 0, l)),
    )

    out_bytes = B * D * N * L * itemsize
    in_bytes = (B * N * L + 2 * D * N) * itemsize
    cost = pl.CostEstimate(flops=2 * B * D * N * L,
                           transcendentals=0,
                           bytes_accessed=out_bytes + in_bytes)

    return pl.pallas_call(
        _param_transform_kernel,
        out_shape=out_shape,
        grid_spec=grid_spec,
        compiler_params=pltpu.CompilerParams(
            dimension_semantics=("parallel", "parallel", "parallel"),
            vmem_limit_bytes=vmem_limit),
        cost_estimate=cost,
    )(scale2d, bias2d, x)


if __name__ == "__main__":
    # Small shapes consistent with the module's 'bnl' path:
    #   b = batch, d = d_inner, n = d_state, l = seq_len, r = LoRA rank
    B, D, N, L, R = 2, 8, 16, 128, 4
    dtype = jnp.float32

    key = jax.random.PRNGKey(0)
    k_x, k_a, k_b, k_bias = jax.random.split(key, 4)

    x = jax.random.normal(k_x, (B, N, L), dtype=dtype)

    # Deterministic synthetic parameter init (kaiming-uniform-like ranges).
    # NOTE: in the original module lora_B is zero-initialized (so scale == 0
    # at init); we use non-zero values here so the kernel compute is visible.
    lora_A = jax.random.uniform(k_a, (R, N), dtype=dtype, minval=-0.5, maxval=0.5)
    lora_B = jax.random.uniform(k_b, (D, R), dtype=dtype, minval=-0.5, maxval=0.5)
    bias = jax.random.uniform(k_bias, (1, D, N, 1), dtype=dtype,
                              minval=-0.1, maxval=0.1)

    out = parameter_transform(x, lora_A, lora_B, bias)
    out = jax.block_until_ready(out)

    # Pure-JAX reference of the PyTorch forward.
    scale_ref = (lora_B @ lora_A)[None, :, :, None]          # (1, D, N, 1)
    y_ref = scale_ref * x[:, None, :, :] + bias              # (B, D, N, L)

    assert out.shape == (B, D, N, L)
    assert jnp.allclose(out, y_ref, atol=1e-5, rtol=1e-5)
    print("KERNEL_OK")
</pallas_src>

<mosaic_0001>
module attributes {stable_mosaic.version = 11 : i64} {
  func.func @_param_transform_kernel(%arg0: i32, %arg1: i32, %arg2: i32, %arg3: memref<8x16xf32, #tpu.memory_space<vmem>>, %arg4: memref<8x16xf32, #tpu.memory_space<vmem>>, %arg5: memref<1x16x128xf32, #tpu.memory_space<vmem>>, %arg6: memref<1x8x16x128xf32, #tpu.memory_space<vmem>>) attributes {dimension_semantics = [#tpu.dimension_semantics<parallel>, #tpu.dimension_semantics<parallel>, #tpu.dimension_semantics<parallel>], iteration_bounds = array<i64: 2, 1, 1>, scalar_prefetch = 0 : i64, scratch_operands = 0 : i64, tpu.core_type = #tpu.core_type<tc>, window_params = [{transform_indices = @transform_0, window_bounds = array<i64: 8, 16>}, {transform_indices = @transform_1, window_bounds = array<i64: 8, 16>}, {transform_indices = @transform_2, window_bounds = array<i64: 1, 16, 128>}, {transform_indices = @transform_3, window_bounds = array<i64: 1, 8, 16, 128>}]} {
    %c0 = arith.constant 0 : index
    %c0_0 = arith.constant 0 : index
    %0 = vector.load %arg3[%c0, %c0_0] : memref<8x16xf32, #tpu.memory_space<vmem>>, vector<8x16xf32>
    %c0_1 = arith.constant 0 : index
    %c0_2 = arith.constant 0 : index
    %1 = vector.load %arg4[%c0_1, %c0_2] : memref<8x16xf32, #tpu.memory_space<vmem>>, vector<8x16xf32>
    %c0_3 = arith.constant 0 : index
    %c0_4 = arith.constant 0 : index
    %c0_5 = arith.constant 0 : index
    %2 = vector.load %arg5[%c0_3, %c0_4, %c0_5] : memref<1x16x128xf32, #tpu.memory_space<vmem>>, vector<1x16x128xf32>
    %3 = vector.shape_cast %0 : vector<8x16xf32> to vector<1x8x16x1xf32>
    %4 = vector.shape_cast %2 : vector<1x16x128xf32> to vector<1x1x16x128xf32>
    %5 = vector.broadcast %3 : vector<1x8x16x1xf32> to vector<1x8x16x128xf32>
    %6 = vector.broadcast %4 : vector<1x1x16x128xf32> to vector<1x8x16x128xf32>
    %7 = arith.mulf %5, %6 : vector<1x8x16x128xf32>
    %8 = vector.shape_cast %1 : vector<8x16xf32> to vector<1x8x16x1xf32>
    %9 = vector.broadcast %8 : vector<1x8x16x1xf32> to vector<1x8x16x128xf32>
    %10 = arith.addf %7, %9 : vector<1x8x16x128xf32>
    %c0_6 = arith.constant 0 : index
    %c0_7 = arith.constant 0 : index
    %c0_8 = arith.constant 0 : index
    %c0_9 = arith.constant 0 : index
    %11 = vector.load %arg6[%c0_6, %c0_7, %c0_8, %c0_9] : memref<1x8x16x128xf32, #tpu.memory_space<vmem>>, vector<1x8x16x128xf32>
    tpu.vector_store %arg6[%c0_6, %c0_7, %c0_8, %c0_9], %10 {strides = array<i32>} : memref<1x8x16x128xf32, #tpu.memory_space<vmem>>, vector<1x8x16x128xf32>,
    return
  }
  func.func @transform_0(%arg0: i32, %arg1: i32, %arg2: i32) -> (i32, i32) {
    %c0_i32 = arith.constant 0 : i32
    %c0_i32_0 = arith.constant 0 : i32
    return %arg2, %c0_i32 : i32, i32
  }
  func.func @transform_1(%arg0: i32, %arg1: i32, %arg2: i32) -> (i32, i32) {
    %c0_i32 = arith.constant 0 : i32
    %c0_i32_0 = arith.constant 0 : i32
    return %arg2, %c0_i32 : i32, i32
  }
  func.func @transform_2(%arg0: i32, %arg1: i32, %arg2: i32) -> (i32, i32, i32) {
    %c0_i32 = arith.constant 0 : i32
    %c0_i32_0 = arith.constant 0 : i32
    return %arg0, %c0_i32, %arg1 : i32, i32, i32
  }
  func.func @transform_3(%arg0: i32, %arg1: i32, %arg2: i32) -> (i32, i32, i32, i32) {
    %c0_i32 = arith.constant 0 : i32
    %c0_i32_0 = arith.constant 0 : i32
    return %arg0, %arg2, %c0_i32, %arg1 : i32, i32, i32, i32
  }
}

</mosaic_0001>

<llo_original>
// kernel: tpu_custom_call.1
$region0: #{tpu_custom_call.1}
  #allocation0 [shape = 'u32[]', space=smem, size = 0x4, offset = 0x4, fixed_abs, tag = 'smem constant byte address 0x4 - core index']
  #allocation1 [shape = 'u32[144,128]{1,0:T(1,128)}', space=vmem, size = 0x12000, scoped, tag = 'internal scratch']
  %s0 = inlined_call_operand.hbm [shape: f32[8,16], index: 0, kind: input, shape index: {}]
  %s1 = inlined_call_operand.hbm [shape: f32[8,16], index: 1, kind: input, shape index: {}]
  %s2 = inlined_call_operand.hbm [shape: f32[2,16,128], index: 2, kind: input, shape index: {}]
  %s3 = inlined_call_operand.hbm [shape: f32[2,8,16,128], index: 3, kind: output, shape index: {}]
  %s4 = sld [smem:[#allocation0]]
  $region57: #{tpu_custom_call.1} parent=0
    _
  %s6 = ssub.s32 1, %s4
  %s7 = scalar_select 0, %s6, %s4
  $region1: #{tpu_custom_call.1} parent=0
    #allocation2 [shape = 'u8[4096]{0}', space=vmem, size = 0x1000, scoped, tag = 'input window, operand 0, single buffered']
    #allocation3 [shape = 's32[2]{0}', space=sflag, size = 0x8, scoped, tag = 'scoped memory for tpu_custom_call.1']
    #allocation4 [shape = 's32[2]{0}', space=sflag, size = 0x8, scoped, tag = 'scoped memory for tpu_custom_call.1']
    #allocation5 [shape = 'u8[4096]{0}', space=vmem, size = 0x1000, scoped, tag = 'input window, operand 1, single buffered']
    #allocation6 [shape = 's32[1]{0}', space=sflag, size = 0x4, scoped, tag = 'scoped memory for tpu_custom_call.1']
    #allocation7 [shape = 'u8[16384]{0}', space=vmem, size = 0x4000, scoped, tag = 'input window, operand 2']
    #allocation8 [shape = 'u8[131072]{0}', space=vmem, size = 0x20000, scoped, tag = 'output window, operand 0']
    %8 = vsyncpa [#allocation3], 0
    %9 = vsyncpa [#allocation6], 0
    %10 = vsyncpa [#allocation4], 0
    %s11 = scalar_lea.sflag [#allocation4], 1
    %12 = vsyncpa %s11, 0
    loop: start=0, step=1, limit=4
    $region2: #{tpu_custom_call.1} parent=1 // loop_pre_header
      _
    $region3: #{tpu_custom_call.1} parent=1 // loop_header
      %s14 = sphi 0, %s18
      %p15 = scmp.ge.s32.totalorder %s14, 4
      %s21 = sphi 0, %s40
      %s22 = sphi 0, %s36
      %s23 = sphi 0, %s32
      %s24 = sphi 0, %s21
      %s25 = sphi 0, %s22
      %s26 = sphi 0, %s23
      %s27 = sphi 0, %s24
      %s28 = sphi 0, %s25
      %s29 = sphi 0, %s26
      %s43 = sphi 0, %s45
      %s46 = sphi 0, %s43
      %s47 = sphi 0, %s46
      %s63 = sphi 0, %s47
      %s69 = sphi 0, %s71
      %s72 = sphi 0, %s69
      %s73 = sphi 0, %s72
      %s89 = sphi 0, %s73
      %s97 = sphi 0, %s99
      %s100 = sphi 0, %s97
      %s101 = sphi 0, %s100
      %s117 = sphi 0, %s101
      %s127 = sphi 0, %s129
      %s130 = sphi 0, %s127
      %s131 = sphi 0, %s130
      %s147 = sphi 0, %s131
    $region4: #{tpu_custom_call.1} parent=1 // loop_header_branch
      %17 = sbr.rel (%p15) target = $region8
    $region5: #{tpu_custom_call.1} parent=1 // loop_body
      %s19 = ssub.s32 %s14, 1
      %s20 = ssub.s32 %s14, 2
      %s30 = sadd.s32 1, %s23
      %p31 = scmp.ge.s32.totalorder %s30, 1
      %s32 = scalar_select %p31, 0, %s30
      %s33 = sadd.s32 1, %s22
      %s34 = scalar_select %p31, %s33, %s22
      %p35 = scmp.ge.s32.totalorder %s34, 1
      %s36 = scalar_select %p35, 0, %s34
      %s37 = sadd.s32 1, %s21
      %s38 = scalar_select %p35, %s37, %s21
      %p39 = scmp.ge.s32.totalorder %s38, 2
      %s40 = scalar_select %p39, 0, %s38
      %s41 = ssub.s32 %s23, %s32
      %p42 = scmp.eq.s32.totalorder %s41, 0
      %s44 = sadd.s32 %s43, 1
      %s45 = scalar_select %p42, %s43, %s44
      %p48 = pneg %p42
      %p49 = scmp.eq.s32.totalorder %s14, 1
      %p50 = por %p48, %p49
      %p51 = scmp.ne.s32.totalorder %s43, %s46
      %p52 = scmp.eq.s32.totalorder %s14, 0
      %p53 = por %p51, %p52
      %p54 = scmp.ne.s32.totalorder %s43, %s46
      %p55 = scmp.eq.s32.totalorder %s19, 1
      %p56 = por %p54, %p55
      %p57 = scmp.ne.s32.totalorder %s46, %s47
      %p58 = scmp.eq.s32.totalorder %s19, 0
      %p59 = por %p57, %p58
      %p60 = scmp.ne.s32.totalorder %s46, %s47
      %p61 = scmp.eq.s32.totalorder %s20, 1
      %p62 = por %p60, %p61
      %p64 = scmp.ne.s32.totalorder %s47, %s63
      %p65 = scmp.eq.s32.totalorder %s20, 0
      %p66 = por %p64, %p65
      %s67 = ssub.s32 %s23, %s32
      %p68 = scmp.eq.s32.totalorder %s67, 0
      %s70 = sadd.s32 %s69, 1
      %s71 = scalar_select %p68, %s69, %s70
      %p74 = pneg %p68
      %p75 = scmp.eq.s32.totalorder %s14, 1
      %p76 = por %p74, %p75
      %p77 = scmp.ne.s32.totalorder %s69, %s72
      %p78 = scmp.eq.s32.totalorder %s14, 0
      %p79 = por %p77, %p78
      %p80 = scmp.ne.s32.totalorder %s69, %s72
      %p81 = scmp.eq.s32.totalorder %s19, 1
      %p82 = por %p80, %p81
      %p83 = scmp.ne.s32.totalorder %s72, %s73
      %p84 = scmp.eq.s32.totalorder %s19, 0
      %p85 = por %p83, %p84
      %p86 = scmp.ne.s32.totalorder %s72, %s73
      %p87 = scmp.eq.s32.totalorder %s20, 1
      %p88 = por %p86, %p87
      %p90 = scmp.ne.s32.totalorder %s73, %s89
      %p91 = scmp.eq.s32.totalorder %s20, 0
      %p92 = por %p90, %p91
      %s93 = ssub.s32 %s21, %s40
      %s94 = ssub.s32 %s22, %s36
      %s95 = sor.u32 %s93, %s94
      %p96 = scmp.eq.s32.totalorder %s95, 0
      %s98 = sadd.s32 %s97, 1
      %s99 = scalar_select %p96, %s97, %s98
      %p102 = pneg %p96
      %p103 = scmp.eq.s32.totalorder %s14, 1
      %p104 = por %p102, %p103
      %p105 = scmp.ne.s32.totalorder %s97, %s100
      %p106 = scmp.eq.s32.totalorder %s14, 0
      %p107 = por %p105, %p106
      %p108 = scmp.ne.s32.totalorder %s97, %s100
      %p109 = scmp.eq.s32.totalorder %s19, 1
      %p110 = por %p108, %p109
      %p111 = scmp.ne.s32.totalorder %s100, %s101
      %p112 = scmp.eq.s32.totalorder %s19, 0
      %p113 = por %p111, %p112
      %p114 = scmp.ne.s32.totalorder %s100, %s101
      %p115 = scmp.eq.s32.totalorder %s20, 1
      %p116 = por %p114, %p115
      %p118 = scmp.ne.s32.totalorder %s101, %s117
      %p119 = scmp.eq.s32.totalorder %s20, 0
      %p120 = por %p118, %p119
      %s121 = ssub.s32 %s21, %s40
      %s122 = ssub.s32 %s23, %s32
      %s123 = sor.u32 %s121, %s122
      %s124 = ssub.s32 %s22, %s36
      %s125 = sor.u32 %s123, %s124
      %p126 = scmp.eq.s32.totalorder %s125, 0
      %s128 = sadd.s32 %s127, 1
      %s129 = scalar_select %p126, %s127, %s128
      %p132 = pneg %p126
      %p133 = scmp.eq.s32.totalorder %s14, 1
      %p134 = por %p132, %p133
      %p135 = scmp.ne.s32.totalorder %s127, %s130
      %p136 = scmp.eq.s32.totalorder %s14, 0
      %p137 = por %p135, %p136
      %p138 = scmp.ne.s32.totalorder %s127, %s130
      %p139 = scmp.eq.s32.totalorder %s19, 1
      %p140 = por %p138, %p139
      %p141 = scmp.ne.s32.totalorder %s130, %s131
      %p142 = scmp.eq.s32.totalorder %s19, 0
      %p143 = por %p141, %p142
      %p144 = scmp.ne.s32.totalorder %s130, %s131
      %p145 = scmp.eq.s32.totalorder %s20, 1
      %p146 = por %p144, %p145
      %p148 = scmp.ne.s32.totalorder %s131, %s147
      %p149 = scmp.eq.s32.totalorder %s20, 0
      %p150 = por %p148, %p149
      %p151 = scmp.le.s32.totalorder 1, %s14
      %p152 = scmp.lt.s32.totalorder %s14, 3
      %p153 = pnand %p151, %p152
      %p154 = pneg %p153
      // Predicated region
      $region9: #{tpu_custom_call.1} parent=5 // pred_check
        _
      $region10: #{tpu_custom_call.1} parent=5 // pred_check_branch
        %156 = sbr.rel (%p153) target = $region12
      $region11: #{tpu_custom_call.1} parent=5 // pred_region
        %s157 = ssub.s32 %s14, 1
        // Predicated region
        $region13: #{tpu_custom_call.1} parent=11 // pred_check
          %p158 = pneg %p59
        $region14: #{tpu_custom_call.1} parent=11 // pred_check_branch
          %160 = sbr.rel (%p158) target = $region16
        $region15: #{tpu_custom_call.1} parent=11 // pred_region
          %s162 = ssub.s32 128, 128
          %163 = vsyncadd [#allocation3], %s162
          %s164 = smul.addr %s26, 128
          %s165 = scalar_lea.hbm %s0, %s164
          %s167 = sshll.u32 [#allocation2], 4
          %s168 = int_to_ptr.vmem [resolvable:$true] %s167
          %170 = dma.hbm_to_vmem [thread:$0]  %s165, 128, %s168, [#allocation3]
        $region16: #{tpu_custom_call.1} parent=11 // pred_fallthru
          _
        // Predicated region
        $region17: #{tpu_custom_call.1} parent=11 // pred_check
          %p171 = pneg %p85
        $region18: #{tpu_custom_call.1} parent=11 // pred_check_branch
          %173 = sbr.rel (%p171) target = $region20
        $region19: #{tpu_custom_call.1} parent=11 // pred_region
          %s175 = ssub.s32 128, 128
          %176 = vsyncadd [#allocation6], %s175
          %s177 = smul.addr %s26, 128
          %s178 = scalar_lea.hbm %s1, %s177
          %s180 = sshll.u32 [#allocation5], 4
          %s181 = int_to_ptr.vmem [resolvable:$true] %s180
          %183 = dma.hbm_to_vmem [thread:$0]  %s178, 128, %s181, [#allocation6]
        $region20: #{tpu_custom_call.1} parent=11 // pred_fallthru
          _
      $region12: #{tpu_custom_call.1} parent=5 // pred_fallthru
        _
      %p184 = scmp.lt.s32.totalorder %s14, 2
      // Predicated region
      $region21: #{tpu_custom_call.1} parent=5 // pred_check
        %p185 = pneg %p184
      $region22: #{tpu_custom_call.1} parent=5 // pred_check_branch
        %187 = sbr.rel (%p185) target = $region24
      $region23: #{tpu_custom_call.1} parent=5 // pred_region
        // Predicated region
        $region25: #{tpu_custom_call.1} parent=23 // pred_check
          %p188 = pneg %p107
        $region26: #{tpu_custom_call.1} parent=23 // pred_check_branch
          %190 = sbr.rel (%p188) target = $region28
        $region27: #{tpu_custom_call.1} parent=23 // pred_region
          %s191 = sand.u32 %s14, 1
          %s192 = scalar_lea.sflag [#allocation3], %s191
          %s193 = sand.u32 %s97, 1
          %s194 = smul.addr %s193, 16
          %s195 = scalar_lea.vmem [#allocation7], %s194
          %s197 = ssub.s32 256, 256
          %198 = vsyncadd %s192, %s197
          %s199 = smul.addr %s21, 2
          %s200 = sadd.s32 %s22, %s199
          %s201 = smul.addr %s200, 128
          %s202 = scalar_lea.hbm %s2, %s201
          %s203 = sshll.u32 %s195, 4
          %s204 = int_to_ptr.vmem [resolvable:$true] %s203
          %209 = dma.hbm_to_vmem [thread:$0]  %s202, 256, %s204, %s192, 128, 128, 8
        $region28: #{tpu_custom_call.1} parent=23 // pred_fallthru
          _
      $region24: #{tpu_custom_call.1} parent=5 // pred_fallthru
        _
      %p210 = scmp.le.s32.totalorder 1, %s14
      %p211 = scmp.lt.s32.totalorder %s14, 3
      %p212 = pnand %p210, %p211
      %p213 = pneg %p212
      // Predicated region
      $region29: #{tpu_custom_call.1} parent=5 // pred_check
        _
      $region30: #{tpu_custom_call.1} parent=5 // pred_check_branch
        %215 = sbr.rel (%p212) target = $region32
      $region31: #{tpu_custom_call.1} parent=5 // pred_region
        %s216 = ssub.s32 %s14, 1
        // Predicated region
        $region33: #{tpu_custom_call.1} parent=31 // pred_check
          %p217 = pneg %p59
        $region34: #{tpu_custom_call.1} parent=31 // pred_check_branch
          %219 = sbr.rel (%p217) target = $region36
        $region35: #{tpu_custom_call.1} parent=31 // pred_region
          %220 = dma.done [#allocation3], 128
        $region36: #{tpu_custom_call.1} parent=31 // pred_fallthru
          _
        // Predicated region
        $region37: #{tpu_custom_call.1} parent=31 // pred_check
          %p221 = pneg %p85
        $region38: #{tpu_custom_call.1} parent=31 // pred_check_branch
          %223 = sbr.rel (%p221) target = $region40
        $region39: #{tpu_custom_call.1} parent=31 // pred_region
          %224 = dma.done [#allocation6], 128
        $region40: #{tpu_custom_call.1} parent=31 // pred_fallthru
          _
        %s225 = sand.u32 %s19, 1
        %s226 = scalar_lea.sflag [#allocation3], %s225
        %s227 = sand.u32 %s100, 1
        %s228 = smul.addr %s227, 16
        %s229 = scalar_lea.vmem [#allocation7], %s228
        // Predicated region
        $region41: #{tpu_custom_call.1} parent=31 // pred_check
          %p230 = pneg %p113
        $region42: #{tpu_custom_call.1} parent=31 // pred_check_branch
          %232 = sbr.rel (%p230) target = $region44
        $region43: #{tpu_custom_call.1} parent=31 // pred_region
          %233 = dma.done %s226, 256
        $region44: #{tpu_custom_call.1} parent=31 // pred_fallthru
          _
        %p234 = pneg %p59
        %p235 = pneg %p56
        %p236 = pneg %p85
        %p237 = pneg %p82
        %s238 = sand.u32 %s19, 1
        %s239 = scalar_lea.sflag [#allocation3], %s238
        %s240 = sand.u32 %s100, 1
        %s241 = smul.addr %s240, 16
        %s242 = scalar_lea.vmem [#allocation7], %s241
        %p243 = pneg %p113
        %p244 = pneg %p110
        %p245 = pneg %p143
        %p246 = pneg %p140
        %s247 = sand.u32 %s130, 1
        %s248 = scalar_lea.sflag [#allocation4], %s247
        %s249 = sand.u32 %s130, 1
        %s250 = smul.addr %s249, 128
        %s251 = scalar_lea.vmem [#allocation8], %s250
        %s252 = smul.u32 8, %s26
        %v253 = vld [vmem:[#allocation2] sm:$0xff]
        %v254 = vld [vmem:[#allocation5] sm:$0xff]
        %v255 = vld [vmem:[%s229] sm:$0xff]
        %v256 = vld [vmem:[%s229 + $0x8] sm:$0xff]
        %v257 = vlaneseq
        %v258 = vshrl.u32 %v257, 7
        %v259 = vsub.s32 0, %v258
        %v260 = vrot.slane %v253, %v259
        %262 = vbcast.lane.b32.xlu0 %v260, 256
        %v263 = vpop.permute.xlu0 %262
        %s265 = sor.u32 256, 8
        %266 = vbcast.lane.b32.xlu0 %v260, %s265
        %v267 = vpop.permute.xlu0 %266
        %v268 = vlaneseq
        %v269 = vshrl.u32 %v268, 7
        %v270 = vsub.s32 1, %v269
        %v271 = vrot.slane %v253, %v270
        %273 = vbcast.lane.b32.xlu0 %v271, 256
        %v274 = vpop.permute.xlu0 %273
        %s276 = sor.u32 256, 8
        %277 = vbcast.lane.b32.xlu0 %v271, %s276
        %v278 = vpop.permute.xlu0 %277
        %v279 = vlaneseq
        %v280 = vshrl.u32 %v279, 7
        %v281 = vsub.s32 2, %v280
        %v282 = vrot.slane %v253, %v281
        %284 = vbcast.lane.b32.xlu0 %v282, 256
        %v285 = vpop.permute.xlu0 %284
        %s287 = sor.u32 256, 8
        %288 = vbcast.lane.b32.xlu0 %v282, %s287
        %v289 = vpop.permute.xlu0 %288
        %v290 = vlaneseq
        %v291 = vshrl.u32 %v290, 7
        %v292 = vsub.s32 3, %v291
        %v293 = vrot.slane %v253, %v292
        %295 = vbcast.lane.b32.xlu0 %v293, 256
        %v296 = vpop.permute.xlu0 %295
        %s298 = sor.u32 256, 8
        %299 = vbcast.lane.b32.xlu0 %v293, %s298
        %v300 = vpop.permute.xlu0 %299
        %v301 = vlaneseq
        %v302 = vshrl.u32 %v301, 7
        %v303 = vsub.s32 4, %v302
        %v304 = vrot.slane %v253, %v303
        %306 = vbcast.lane.b32.xlu0 %v304, 256
        %v307 = vpop.permute.xlu0 %306
        %s309 = sor.u32 256, 8
        %310 = vbcast.lane.b32.xlu0 %v304, %s309
        %v311 = vpop.permute.xlu0 %310
        %v312 = vlaneseq
        %v313 = vshrl.u32 %v312, 7
        %v314 = vsub.s32 5, %v313
        %v315 = vrot.slane %v253, %v314
        %317 = vbcast.lane.b32.xlu0 %v315, 256
        %v318 = vpop.permute.xlu0 %317
        %s320 = sor.u32 256, 8
        %321 = vbcast.lane.b32.xlu0 %v315, %s320
        %v322 = vpop.permute.xlu0 %321
        %v323 = vlaneseq
        %v324 = vshrl.u32 %v323, 7
        %v325 = vsub.s32 6, %v324
        %v326 = vrot.slane %v253, %v325
        %328 = vbcast.lane.b32.xlu0 %v326, 256
        %v329 = vpop.permute.xlu0 %328
        %s331 = sor.u32 256, 8
        %332 = vbcast.lane.b32.xlu0 %v326, %s331
        %v333 = vpop.permute.xlu0 %332
        %v334 = vlaneseq
        %v335 = vshrl.u32 %v334, 7
        %v336 = vsub.s32 7, %v335
        %v337 = vrot.slane %v253, %v336
        %339 = vbcast.lane.b32.xlu0 %v337, 256
        %v340 = vpop.permute.xlu0 %339
        %s342 = sor.u32 256, 8
        %343 = vbcast.lane.b32.xlu0 %v337, %s342
        %v344 = vpop.permute.xlu0 %343
        %v345 = vmul.f32 %v263, %v255
        %v346 = vmul.f32 %v267, %v256
        %v347 = vmul.f32 %v274, %v255
        %v348 = vmul.f32 %v278, %v256
        %v349 = vmul.f32 %v285, %v255
        %v350 = vmul.f32 %v289, %v256
        %v351 = vmul.f32 %v296, %v255
        %v352 = vmul.f32 %v300, %v256
        %v353 = vmul.f32 %v307, %v255
        %v354 = vmul.f32 %v311, %v256
        %v355 = vmul.f32 %v318, %v255
        %v356 = vmul.f32 %v322, %v256
        %v357 = vmul.f32 %v329, %v255
        %v358 = vmul.f32 %v333, %v256
        %v359 = vmul.f32 %v340, %v255
        %v360 = vmul.f32 %v344, %v256
        %v361 = vlaneseq
        %v362 = vshrl.u32 %v361, 7
        %v363 = vsub.s32 0, %v362
        %v364 = vrot.slane %v254, %v363
        %366 = vbcast.lane.b32.xlu0 %v364, 256
        %v367 = vpop.permute.xlu0 %366
        %s369 = sor.u32 256, 8
        %370 = vbcast.lane.b32.xlu0 %v364, %s369
        %v371 = vpop.permute.xlu0 %370
        %v372 = vlaneseq
        %v373 = vshrl.u32 %v372, 7
        %v374 = vsub.s32 1, %v373
        %v375 = vrot.slane %v254, %v374
        %377 = vbcast.lane.b32.xlu0 %v375, 256
        %v378 = vpop.permute.xlu0 %377
        %s380 = sor.u32 256, 8
        %381 = vbcast.lane.b32.xlu0 %v375, %s380
        %v382 = vpop.permute.xlu0 %381
        %v383 = vlaneseq
        %v384 = vshrl.u32 %v383, 7
        %v385 = vsub.s32 2, %v384
        %v386 = vrot.slane %v254, %v385
        %388 = vbcast.lane.b32.xlu0 %v386, 256
        %v389 = vpop.permute.xlu0 %388
        %s391 = sor.u32 256, 8
        %392 = vbcast.lane.b32.xlu0 %v386, %s391
        %v393 = vpop.permute.xlu0 %392
        %v394 = vlaneseq
        %v395 = vshrl.u32 %v394, 7
        %v396 = vsub.s32 3, %v395
        %v397 = vrot.slane %v254, %v396
        %399 = vbcast.lane.b32.xlu0 %v397, 256
        %v400 = vpop.permute.xlu0 %399
        %s402 = sor.u32 256, 8
        %403 = vbcast.lane.b32.xlu0 %v397, %s402
        %v404 = vpop.permute.xlu0 %403
        %v405 = vlaneseq
        %v406 = vshrl.u32 %v405, 7
        %v407 = vsub.s32 4, %v406
        %v408 = vrot.slane %v254, %v407
        %410 = vbcast.lane.b32.xlu0 %v408, 256
        %v411 = vpop.permute.xlu0 %410
        %s413 = sor.u32 256, 8
        %414 = vbcast.lane.b32.xlu0 %v408, %s413
        %v415 = vpop.permute.xlu0 %414
        %v416 = vlaneseq
        %v417 = vshrl.u32 %v416, 7
        %v418 = vsub.s32 5, %v417
        %v419 = vrot.slane %v254, %v418
        %421 = vbcast.lane.b32.xlu0 %v419, 256
        %v422 = vpop.permute.xlu0 %421
        %s424 = sor.u32 256, 8
        %425 = vbcast.lane.b32.xlu0 %v419, %s424
        %v426 = vpop.permute.xlu0 %425
        %v427 = vlaneseq
        %v428 = vshrl.u32 %v427, 7
        %v429 = vsub.s32 6, %v428
        %v430 = vrot.slane %v254, %v429
        %432 = vbcast.lane.b32.xlu0 %v430, 256
        %v433 = vpop.permute.xlu0 %432
        %s435 = sor.u32 256, 8
        %436 = vbcast.lane.b32.xlu0 %v430, %s435
        %v437 = vpop.permute.xlu0 %436
        %v438 = vlaneseq
        %v439 = vshrl.u32 %v438, 7
        %v440 = vsub.s32 7, %v439
        %v441 = vrot.slane %v254, %v440
        %443 = vbcast.lane.b32.xlu0 %v441, 256
        %v444 = vpop.permute.xlu0 %443
        %s446 = sor.u32 256, 8
        %447 = vbcast.lane.b32.xlu0 %v441, %s446
        %v448 = vpop.permute.xlu0 %447
        %v449 = vadd.f32 %v345, %v367
        %v450 = vadd.f32 %v346, %v371
        %v451 = vadd.f32 %v347, %v378
        %v452 = vadd.f32 %v348, %v382
        %v453 = vadd.f32 %v349, %v389
        %v454 = vadd.f32 %v350, %v393
        %v455 = vadd.f32 %v351, %v400
        %v456 = vadd.f32 %v352, %v404
        %v457 = vadd.f32 %v353, %v411
        %v458 = vadd.f32 %v354, %v415
        %v459 = vadd.f32 %v355, %v422
        %v460 = vadd.f32 %v356, %v426
        %v461 = vadd.f32 %v357, %v433
        %v462 = vadd.f32 %v358, %v437
        %v463 = vadd.f32 %v359, %v444
        %v464 = vadd.f32 %v360, %v448
        %465 = vst [vmem:[%s251] sm:$0xff] %v449
        %466 = vst [vmem:[%s251 + $0x8] sm:$0xff] %v450
        %467 = vst [vmem:[%s251 + $0x10] sm:$0xff] %v451
        %468 = vst [vmem:[%s251 + $0x18] sm:$0xff] %v452
        %469 = vst [vmem:[%s251 + $0x20] sm:$0xff] %v453
        %470 = vst [vmem:[%s251 + $0x28] sm:$0xff] %v454
        %471 = vst [vmem:[%s251 + $0x30] sm:$0xff] %v455
        %472 = vst [vmem:[%s251 + $0x38] sm:$0xff] %v456
        %473 = vst [vmem:[%s251 + $0x40] sm:$0xff] %v457
        %474 = vst [vmem:[%s251 + $0x48] sm:$0xff] %v458
        %475 = vst [vmem:[%s251 + $0x50] sm:$0xff] %v459
        %476 = vst [vmem:[%s251 + $0x58] sm:$0xff] %v460
        %477 = vst [vmem:[%s251 + $0x60] sm:$0xff] %v461
        %478 = vst [vmem:[%s251 + $0x68] sm:$0xff] %v462
        %479 = vst [vmem:[%s251 + $0x70] sm:$0xff] %v463
        %480 = vst [vmem:[%s251 + $0x78] sm:$0xff] %v464
        %s481 = sand.u32 %s130, 1
        %s482 = scalar_lea.sflag [#allocation4], %s481
        %s483 = sand.u32 %s130, 1
        %s484 = smul.addr %s483, 128
        %s485 = scalar_lea.vmem [#allocation8], %s484
        // Predicated region
        $region45: #{tpu_custom_call.1} parent=31 // pred_check
          %p486 = pneg %p140
        $region46: #{tpu_custom_call.1} parent=31 // pred_check_branch
          %488 = sbr.rel (%p486) target = $region48
        $region47: #{tpu_custom_call.1} parent=31 // pred_region
          %s489 = smul.u32 8, %s26
          %s491 = ssub.s32 2048, 2048
          %492 = vsyncadd %s482, %s491
          %s493 = smul.addr %s489, 2
          %s494 = sadd.s32 %s25, %s493
          %s495 = smul.addr %s24, 16
          %s496 = sadd.s32 %s494, %s495
          %s497 = smul.addr %s496, 128
          %s498 = scalar_lea.hbm %s3, %s497
          %s499 = sshll.u32 %s485, 4
          %s500 = int_to_ptr.vmem [resolvable:$true] %s499
          %505 = dma.vmem_to_hbm [thread:$0]  %s500, 2048, %s498, %s482, 128, 128, 8
        $region48: #{tpu_custom_call.1} parent=31 // pred_fallthru
          _
      $region32: #{tpu_custom_call.1} parent=5 // pred_fallthru
        _
      %p506 = scmp.le.s32.totalorder 2, %s14
      // Predicated region
      $region49: #{tpu_custom_call.1} parent=5 // pred_check
        %p507 = pneg %p506
      $region50: #{tpu_custom_call.1} parent=5 // pred_check_branch
        %509 = sbr.rel (%p507) target = $region52
      $region51: #{tpu_custom_call.1} parent=5 // pred_region
        %s510 = ssub.s32 %s14, 2
        // Predicated region
        $region53: #{tpu_custom_call.1} parent=51 // pred_check
          %p511 = pneg %p146
        $region54: #{tpu_custom_call.1} parent=51 // pred_check_branch
          %513 = sbr.rel (%p511) target = $region56
        $region55: #{tpu_custom_call.1} parent=51 // pred_region
          %s514 = sand.u32 %s131, 1
          %s515 = scalar_lea.sflag [#allocation4], %s514
          %s516 = sand.u32 %s131, 1
          %s517 = smul.addr %s516, 128
          %s518 = scalar_lea.vmem [#allocation8], %s517
          %519 = dma.done %s515, 2048
        $region56: #{tpu_custom_call.1} parent=51 // pred_fallthru
          _
      $region52: #{tpu_custom_call.1} parent=5 // pred_fallthru
        _
    $region6: #{tpu_custom_call.1} parent=1 // loop_footer
      %s18 = sadd.s32 1, %s14
    $region7: #{tpu_custom_call.1} parent=1 // loop_footer_branch
      %13 = sbr.rel target = $region3
    $region8: #{tpu_custom_call.1} parent=1 // loop_exit
      _
    %520 = vsyncpa [#allocation3], 1
    %s521 = scalar_lea.sflag [#allocation3], 1
    %522 = vsyncpa %s521, 1
    %523 = vsyncpa [#allocation6], 1
    %524 = vsyncpa [#allocation4], 1
    %s525 = scalar_lea.sflag [#allocation4], 1
    %526 = vsyncpa %s525, 1

</llo_original>
